<compile_context>
chip_gen: v5e
topology: v5e:2x2
jax: 0.10.0
libtpu: 0.0.40
codegen_flags: <defaults>
</compile_context>

<pallas_src>
import jax
import jax.numpy as jnp
from jax.experimental import pallas as pl
from jax.experimental.pallas import tpu as pltpu


# ---------------------------------------------------------------------------
# kernel bodies
# ---------------------------------------------------------------------------
def _make_kernel_channel_groups(group_len, eps):
    """c1 % 16 == 0: every flat group = (c1 // 16) whole channels x all pixels."""
    inv_n = 1.0 / float(group_len)
    inv_nm1 = 1.0 / float(max(group_len - 1, 1))       # torch .std() is unbiased

    def kernel(x_ref, w4_ref, b4_ref, p_ref, gamma_ref, beta_ref,
               w1_ref, b1_ref, o_ref):
        x = x_ref[0]                                                  # (C1, HW) f32

        # global pixel gate: sigmoid(1x1 conv c1 -> 1).  M=1 matmul is ~1% MXU
        # utilisation but the MXU is otherwise idle here (stats matmuls gone).
        logit = jnp.dot(w4_ref[...], x,
                        preferred_element_type=jnp.float32) + b4_ref[...]   # (1, HW)
        xg = x * jax.nn.sigmoid(logit)                                # gated feats

        # group statistics of the ORIGINAL x: exact f32 lane reductions (XLU),
        # then a tiny (C1,C1)@(C1,1) matmul with the 0/1 "same-group" matrix P
        # that both sums the channels of each group and broadcasts the group
        # value back to every channel.  No (16,HW)/(C1,HW) temporaries.
        xsum = jnp.sum(x, axis=-1, keepdims=True)                     # (C1, 1)
        xsq = jnp.sum(x * x, axis=-1, keepdims=True)                  # (C1, 1)
        gsum = jnp.dot(p_ref[...], xsum, preferred_element_type=jnp.float32)
        gsq = jnp.dot(p_ref[...], xsq, preferred_element_type=jnp.float32)
        mean_c = gsum * inv_n                                         # (C1, 1)
        var_c = jnp.maximum(gsq - gsum * mean_c, 0.0) * inv_nm1
        inv_c = 1.0 / (jnp.sqrt(var_c) + eps)

        # per-channel affine applied as a single lane-broadcast FMA (VPU)
        scale_c = gamma_ref[...] * inv_c                              # (C1, 1)
        x_gui = (xg - mean_c) * scale_c + beta_ref[...]               # (C1, HW)

        # conv1: 1x1 conv c1 -> c2 (+bias); bf16 MXU, f32 accumulate
        z = jnp.dot(w1_ref[...], x_gui.astype(jnp.bfloat16),
                    preferred_element_type=jnp.float32) + b1_ref[...]
        o_ref[0] = z.astype(o_ref.dtype)

    return kernel


def _make_kernel_spatial_groups(group_len, eps):
    """16 % c1 == 0: every channel splits into m = 16//c1 spatial segments."""
    inv_n = 1.0 / float(group_len)
    inv_nm1 = 1.0 / float(max(group_len - 1, 1))

    def kernel(x_ref, w4_ref, b4_ref, sel_ref, selt_ref, gamma_ref, beta_ref,
               w1_ref, b1_ref, o_ref):
        x = x_ref[0]                                                  # (C1, HW) f32

        logit = jnp.dot(w4_ref[...], x,
                        preferred_element_type=jnp.float32) + b4_ref[...]
        xg = x * jax.nn.sigmoid(logit)

        # per-(channel, segment) sums: one narrow matmul per moment against the
        # 0/1 segment selector (HW, m); the reduction runs over full HW depth.
        ssum = jnp.dot(x, sel_ref[...], preferred_element_type=jnp.float32)   # (C1, m)
        ssq = jnp.dot(x * x, sel_ref[...], preferred_element_type=jnp.float32)
        mean_cs = ssum * inv_n
        var_cs = jnp.maximum(ssq - ssum * mean_cs, 0.0) * inv_nm1
        inv_cs = 1.0 / (jnp.sqrt(var_cs) + eps)
        scale_cs = gamma_ref[...] * inv_cs                            # (C1, m)

        # broadcast the per-segment affine back to (C1, HW) (K=m tiny matmuls;
        # unavoidable here because the group boundary cuts across lanes).
        mean_map = jnp.dot(mean_cs, selt_ref[...],
                           preferred_element_type=jnp.float32)        # (C1, HW)
        scale_map = jnp.dot(scale_cs, selt_ref[...],
                            preferred_element_type=jnp.float32)       # (C1, HW)
        x_gui = (xg - mean_map) * scale_map + beta_ref[...]

        z = jnp.dot(w1_ref[...], x_gui.astype(jnp.bfloat16),
                    preferred_element_type=jnp.float32) + b1_ref[...]
        o_ref[0] = z.astype(o_ref.dtype)

    return kernel


# ---------------------------------------------------------------------------
# wrapper
# ---------------------------------------------------------------------------
def _pick_vmem_limit(est_bytes):
    """Per-generation VMEM budget: raise above 32 MiB when the whole-sample
    block needs it (v6e has 128 MiB physical), but never above 75% of the
    physical capacity (64 MiB on v7x)."""
    try:
        cap = int(pltpu.get_tpu_info().vmem_capacity_bytes)
    except Exception:
        cap = 64 * 1024 * 1024          # conservative: v7x per-core physical VMEM
    want = max(32 * 1024 * 1024, 2 * int(est_bytes))
    return int(min(want, (cap * 3) // 4))


def gunit_forward(x_nchw, params, eps=1e-10, out_dtype=None):
    n, c1, h, w = x_nchw.shape
    hw = h * w
    c2 = params["w1"].shape[0]
    out_dtype = x_nchw.dtype if out_dtype is None else out_dtype
    if (c1 * hw) % 16 != 0:
        raise ValueError("C*H*W must be divisible by 16 (torch reshape(N,16,-1)).")

    x3 = x_nchw.reshape(n, c1, hw)                     # contiguous -> free reshape
    const = lambda i: (0, 0)                           # weights stay VMEM-resident

    if c1 % 16 == 0:
        # Optimized common case: each flat group = c1//16 whole channels.
        k = c1 // 16
        grp = jnp.arange(c1) // k
        p_mat = (grp[:, None] == grp[None, :]).astype(jnp.float32)      # (c1, c1)
        kernel = _make_kernel_channel_groups(k * hw, eps)
        extra_args = (p_mat,)
        extra_specs = (pl.BlockSpec((c1, c1), const),)
    elif 16 % c1 == 0 and hw % (16 // c1) == 0:
        # Fallback: each channel splits into m = 16//c1 contiguous segments.
        m = 16 // c1
        seg = hw // m
        col = jnp.arange(hw) // seg
        sel = (col[:, None] == jnp.arange(m)[None, :]).astype(jnp.float32)  # (hw, m)
        kernel = _make_kernel_spatial_groups(seg, eps)
        extra_args = (sel, sel.T)
        extra_specs = (pl.BlockSpec((hw, m), const), pl.BlockSpec((m, hw), const))
    else:
        raise ValueError(
            "GUnit Pallas port requires c1 % 16 == 0, or 16 % c1 == 0 with "
            "H*W divisible by 16 // c1.")

    # rough per-step VMEM need: double-buffered x/out blocks + kernel temps
    est_vmem = 4 * hw * (6 * c1 + 3 * c2) + (1 << 21)
    vmem_limit = _pick_vmem_limit(est_vmem)

    out3 = pl.pallas_call(
        kernel,
        out_shape=jax.ShapeDtypeStruct((n, c2, hw), out_dtype),
        grid=(n,),
        in_specs=[
            pl.BlockSpec((1, c1, hw), lambda i: (i, 0, 0)),   # x (one sample/step)
            pl.BlockSpec((1, c1), const),                     # conv4_gobal weight
            pl.BlockSpec((1, 1), const),                      # conv4_gobal bias
            *extra_specs,                                     # group selector(s)
            pl.BlockSpec((c1, 1), const),                     # gamma
            pl.BlockSpec((c1, 1), const),                     # beta
            pl.BlockSpec((c2, c1), const),                    # conv1 weight (bf16)
            pl.BlockSpec((c2, 1), const),                     # conv1 bias
        ],
        out_specs=pl.BlockSpec((1, c2, hw), lambda i: (i, 0, 0)),
        compiler_params=pltpu.CompilerParams(
            dimension_semantics=("parallel",),                # megacore over batch
            vmem_limit_bytes=vmem_limit,
        ),
    )(x3, params["w4"], params["b4"], *extra_args,
      params["gamma"], params["beta"],
      params["w1"].astype(jnp.bfloat16), params["b1"])
    return out3.reshape(n, c2, h, w)


# ---------------------------------------------------------------------------
# deterministic synthetic parameters + pure-JAX reference
# ---------------------------------------------------------------------------
def init_gunit_params(key, c1, c2):
    k = jax.random.split(key, 5)
    return {
        "w4": 0.5 * jax.random.normal(k[0], (1, c1), jnp.float32),   # conv4_gobal.weight
        "b4": 0.1 * jax.random.normal(k[1], (1, 1), jnp.float32),    # conv4_gobal.bias
        "gamma": jax.random.normal(k[2], (c1, 1), jnp.float32),      # Parameter(randn(c1,1,1))
        "beta": jnp.zeros((c1, 1), jnp.float32),                     # Parameter(zeros(c1,1,1))
        "w1": 0.5 * jax.random.normal(k[3], (c2, c1), jnp.float32),  # conv1.weight
        "b1": 0.1 * jax.random.normal(k[4], (c2, 1), jnp.float32),   # conv1.bias
    }


def gunit_reference(x, params, eps=1e-10):
    n, c1, h, w = x.shape
    logit = jnp.einsum("c,nchw->nhw", params["w4"][0], x) + params["b4"][0, 0]
    xg = jax.nn.sigmoid(logit)[:, None] * x                  # == torch.cat(out, 1)
    xs = x.reshape(n, 16, -1)
    mean = jnp.mean(xs, axis=2, keepdims=True)
    std = jnp.std(xs, axis=2, keepdims=True, ddof=1)
    xn = ((xg.reshape(n, 16, -1) - mean) / (std + eps)).reshape(n, c1, h, w)
    x_gui = (xn * params["gamma"].reshape(1, c1, 1, 1)
             + params["beta"].reshape(1, c1, 1, 1))
    return (jnp.einsum("oc,nchw->nohw", params["w1"], x_gui)
            + params["b1"].reshape(1, -1, 1, 1))


if __name__ == "__main__":
    key = jax.random.PRNGKey(0)
    configs = [
        # (n, c1, c2, h, w)
        (2, 16, 32, 16, 16),   # c1 % 16 == 0  -> optimized per-channel-group path
        (2, 4, 8, 16, 16),     # 16 % c1 == 0  -> spatial-segment fallback path
    ]
    for (n, c1, c2, h, w) in configs:
        key, kx, kp = jax.random.split(key, 3)
        x = jax.random.normal(kx, (n, c1, h, w), jnp.float32)    # NCHW, like torch
        params = init_gunit_params(kp, c1, c2)

        out = jax.block_until_ready(jax.jit(gunit_forward)(x, params))
        assert out.shape == (n, c2, h, w), out.shape

        ref = gunit_reference(x, params)
        # tolerance covers the documented bf16 MXU final conv (~1e-2 relative)
        err = float(jnp.max(jnp.abs(out - ref) / (1.0 + jnp.abs(ref))))
        assert err < 5e-2, f"mismatch vs pure-JAX reference (c1={c1}): {err}"
    print("KERNEL_OK")
</pallas_src>

<mosaic_0001>
module attributes {stable_mosaic.version = 11 : i64} {
  func.func @kernel(%arg0: i32, %arg1: memref<1x16x256xf32, #tpu.memory_space<vmem>>, %arg2: memref<1x16xf32, #tpu.memory_space<vmem>>, %arg3: memref<1x1xf32, #tpu.memory_space<vmem>>, %arg4: memref<16x16xf32, #tpu.memory_space<vmem>>, %arg5: memref<16x1xf32, #tpu.memory_space<vmem>>, %arg6: memref<16x1xf32, #tpu.memory_space<vmem>>, %arg7: memref<32x16xbf16, #tpu.memory_space<vmem>>, %arg8: memref<32x1xf32, #tpu.memory_space<vmem>>, %arg9: memref<1x32x256xf32, #tpu.memory_space<vmem>>) attributes {dimension_semantics = [#tpu.dimension_semantics<parallel>], iteration_bounds = array<i64: 2>, scalar_prefetch = 0 : i64, scratch_operands = 0 : i64, tpu.core_type = #tpu.core_type<tc>, window_params = [{transform_indices = @transform_0, window_bounds = array<i64: 1, 16, 256>}, {pipeline_mode = #tpu.pipeline_mode<synchronous>, transform_indices = @transform_1, window_bounds = array<i64: 1, 16>}, {pipeline_mode = #tpu.pipeline_mode<synchronous>, transform_indices = @transform_2, window_bounds = array<i64: 1, 1>}, {pipeline_mode = #tpu.pipeline_mode<synchronous>, transform_indices = @transform_3, window_bounds = array<i64: 16, 16>}, {pipeline_mode = #tpu.pipeline_mode<synchronous>, transform_indices = @transform_4, window_bounds = array<i64: 16, 1>}, {pipeline_mode = #tpu.pipeline_mode<synchronous>, transform_indices = @transform_5, window_bounds = array<i64: 16, 1>}, {pipeline_mode = #tpu.pipeline_mode<synchronous>, transform_indices = @transform_6, window_bounds = array<i64: 32, 16>}, {pipeline_mode = #tpu.pipeline_mode<synchronous>, transform_indices = @transform_7, window_bounds = array<i64: 32, 1>}, {transform_indices = @transform_8, window_bounds = array<i64: 1, 32, 256>}]} {
    %c0 = arith.constant 0 : index
    %c0_0 = arith.constant 0 : index
    %c0_1 = arith.constant 0 : index
    %0 = vector.load %arg1[%c0, %c0_0, %c0_1] : memref<1x16x256xf32, #tpu.memory_space<vmem>>, vector<1x16x256xf32>
    %1 = vector.shape_cast %0 : vector<1x16x256xf32> to vector<16x256xf32>
    %c0_2 = arith.constant 0 : index
    %c0_3 = arith.constant 0 : index
    %2 = vector.load %arg2[%c0_2, %c0_3] : memref<1x16xf32, #tpu.memory_space<vmem>>, vector<1x16xf32>
    %cst = arith.constant dense<0.000000e+00> : vector<1x256xf32>
    %3 = tpu.matmul %2, %1, %cst {dimension_numbers = #tpu.dot_dimension_numbers<[1], [0], [0], [1], [0, 0, 1, 1], [], []>} : vector<1x16xf32>, vector<16x256xf32>, vector<1x256xf32> -> vector<1x256xf32>
    %c0_4 = arith.constant 0 : index
    %c0_5 = arith.constant 0 : index
    %4 = vector.load %arg3[%c0_4, %c0_5] : memref<1x1xf32, #tpu.memory_space<vmem>>, vector<1x1xf32>
    %5 = vector.broadcast %4 : vector<1x1xf32> to vector<1x256xf32>
    %6 = arith.addf %3, %5 : vector<1x256xf32>
    %7 = arith.negf %6 : vector<1x256xf32>
    %8 = math.exp %7 : vector<1x256xf32>
    %cst_6 = arith.constant 1.000000e+00 : f32
    %9 = vector.broadcast %cst_6 : f32 to vector<1x256xf32>
    %10 = arith.addf %9, %8 : vector<1x256xf32>
    %11 = arith.divf %9, %10 : vector<1x256xf32>
    %12 = vector.broadcast %11 : vector<1x256xf32> to vector<16x256xf32>
    %13 = arith.mulf %1, %12 : vector<16x256xf32>
    %cst_7 = arith.constant dense<0.000000e+00> : vector<16xf32>
    %14 = vector.multi_reduction <add>, %1, %cst_7 [1] : vector<16x256xf32> to vector<16xf32>
    %15 = vector.shape_cast %14 : vector<16xf32> to vector<16x1xf32>
    %16 = arith.mulf %1, %1 : vector<16x256xf32>
    %cst_8 = arith.constant dense<0.000000e+00> : vector<16xf32>
    %17 = vector.multi_reduction <add>, %16, %cst_8 [1] : vector<16x256xf32> to vector<16xf32>
    %18 = vector.shape_cast %17 : vector<16xf32> to vector<16x1xf32>
    %c0_9 = arith.constant 0 : index
    %c0_10 = arith.constant 0 : index
    %19 = vector.load %arg4[%c0_9, %c0_10] : memref<16x16xf32, #tpu.memory_space<vmem>>, vector<16x16xf32>
    %cst_11 = arith.constant dense<0.000000e+00> : vector<16x1xf32>
    %20 = tpu.matmul %19, %15, %cst_11 {dimension_numbers = #tpu.dot_dimension_numbers<[1], [0], [0], [1], [0, 0, 1, 1], [], []>} : vector<16x16xf32>, vector<16x1xf32>, vector<16x1xf32> -> vector<16x1xf32>
    %c0_12 = arith.constant 0 : index
    %c0_13 = arith.constant 0 : index
    %21 = vector.load %arg4[%c0_12, %c0_13] : memref<16x16xf32, #tpu.memory_space<vmem>>, vector<16x16xf32>
    %cst_14 = arith.constant dense<0.000000e+00> : vector<16x1xf32>
    %22 = tpu.matmul %21, %18, %cst_14 {dimension_numbers = #tpu.dot_dimension_numbers<[1], [0], [0], [1], [0, 0, 1, 1], [], []>} : vector<16x16xf32>, vector<16x1xf32>, vector<16x1xf32> -> vector<16x1xf32>
    %cst_15 = arith.constant 3.906250e-03 : f32
    %23 = vector.broadcast %cst_15 : f32 to vector<16x1xf32>
    %24 = arith.mulf %20, %23 : vector<16x1xf32>
    %25 = arith.mulf %20, %24 : vector<16x1xf32>
    %26 = arith.subf %22, %25 : vector<16x1xf32>
    %cst_16 = arith.constant 0.000000e+00 : f32
    %27 = vector.broadcast %cst_16 : f32 to vector<16x1xf32>
    %28 = arith.maximumf %26, %27 : vector<16x1xf32>
    %cst_17 = arith.constant 0.00392156886 : f32
    %29 = vector.broadcast %cst_17 : f32 to vector<16x1xf32>
    %30 = arith.mulf %28, %29 : vector<16x1xf32>
    %31 = math.sqrt %30 : vector<16x1xf32>
    %cst_18 = arith.constant 1.000000e-10 : f32
    %32 = vector.broadcast %cst_18 : f32 to vector<16x1xf32>
    %33 = arith.addf %31, %32 : vector<16x1xf32>
    %cst_19 = arith.constant 1.000000e+00 : f32
    %34 = vector.broadcast %cst_19 : f32 to vector<16x1xf32>
    %35 = arith.divf %34, %33 : vector<16x1xf32>
    %c0_20 = arith.constant 0 : index
    %c0_21 = arith.constant 0 : index
    %36 = vector.load %arg5[%c0_20, %c0_21] : memref<16x1xf32, #tpu.memory_space<vmem>>, vector<16x1xf32>
    %37 = arith.mulf %36, %35 : vector<16x1xf32>
    %38 = vector.broadcast %24 : vector<16x1xf32> to vector<16x256xf32>
    %39 = arith.subf %13, %38 : vector<16x256xf32>
    %40 = vector.broadcast %37 : vector<16x1xf32> to vector<16x256xf32>
    %41 = arith.mulf %39, %40 : vector<16x256xf32>
    %c0_22 = arith.constant 0 : index
    %c0_23 = arith.constant 0 : index
    %42 = vector.load %arg6[%c0_22, %c0_23] : memref<16x1xf32, #tpu.memory_space<vmem>>, vector<16x1xf32>
    %43 = vector.broadcast %42 : vector<16x1xf32> to vector<16x256xf32>
    %44 = arith.addf %41, %43 : vector<16x256xf32>
    %c0_24 = arith.constant 0 : index
    %c0_25 = arith.constant 0 : index
    %45 = vector.load %arg7[%c0_24, %c0_25] : memref<32x16xbf16, #tpu.memory_space<vmem>>, vector<32x16xbf16>
    %46 = arith.truncf %44 : vector<16x256xf32> to vector<16x256xbf16>
    %cst_26 = arith.constant dense<0.000000e+00> : vector<32x256xf32>
    %47 = tpu.matmul %45, %46, %cst_26 {dimension_numbers = #tpu.dot_dimension_numbers<[1], [0], [0], [1], [0, 0, 1, 1], [], []>} : vector<32x16xbf16>, vector<16x256xbf16>, vector<32x256xf32> -> vector<32x256xf32>
    %c0_27 = arith.constant 0 : index
    %c0_28 = arith.constant 0 : index
    %48 = vector.load %arg8[%c0_27, %c0_28] : memref<32x1xf32, #tpu.memory_space<vmem>>, vector<32x1xf32>
    %49 = vector.broadcast %48 : vector<32x1xf32> to vector<32x256xf32>
    %50 = arith.addf %47, %49 : vector<32x256xf32>
    %c0_29 = arith.constant 0 : index
    %c0_30 = arith.constant 0 : index
    %c0_31 = arith.constant 0 : index
    %51 = vector.load %arg9[%c0_29, %c0_30, %c0_31] : memref<1x32x256xf32, #tpu.memory_space<vmem>>, vector<1x32x256xf32>
    %52 = vector.shape_cast %51 : vector<1x32x256xf32> to vector<32x256xf32>
    %53 = vector.shape_cast %50 : vector<32x256xf32> to vector<1x32x256xf32>
    tpu.vector_store %arg9[%c0_29, %c0_30, %c0_31], %53 {strides = array<i32>} : memref<1x32x256xf32, #tpu.memory_space<vmem>>, vector<1x32x256xf32>,
    return
  }
  func.func @transform_0(%arg0: i32) -> (i32, i32, i32) {
    %c0_i32 = arith.constant 0 : i32
    %c0_i32_0 = arith.constant 0 : i32
    %c0_i32_1 = arith.constant 0 : i32
    return %arg0, %c0_i32, %c0_i32_0 : i32, i32, i32
  }
  func.func @transform_1(%arg0: i32) -> (i32, i32) {
    %c0_i32 = arith.constant 0 : i32
    %c0_i32_0 = arith.constant 0 : i32
    %c0_i32_1 = arith.constant 0 : i32
    return %c0_i32, %c0_i32_0 : i32, i32
  }
  func.func @transform_2(%arg0: i32) -> (i32, i32) {
    %c0_i32 = arith.constant 0 : i32
    %c0_i32_0 = arith.constant 0 : i32
    %c0_i32_1 = arith.constant 0 : i32
    return %c0_i32, %c0_i32_0 : i32, i32
  }
  func.func @transform_3(%arg0: i32) -> (i32, i32) {
    %c0_i32 = arith.constant 0 : i32
    %c0_i32_0 = arith.constant 0 : i32
    %c0_i32_1 = arith.constant 0 : i32
    return %c0_i32, %c0_i32_0 : i32, i32
  }
  func.func @transform_4(%arg0: i32) -> (i32, i32) {
    %c0_i32 = arith.constant 0 : i32
    %c0_i32_0 = arith.constant 0 : i32
    %c0_i32_1 = arith.constant 0 : i32
    return %c0_i32, %c0_i32_0 : i32, i32
  }
  func.func @transform_5(%arg0: i32) -> (i32, i32) {
    %c0_i32 = arith.constant 0 : i32
    %c0_i32_0 = arith.constant 0 : i32
    %c0_i32_1 = arith.constant 0 : i32
    return %c0_i32, %c0_i32_0 : i32, i32
  }
  func.func @transform_6(%arg0: i32) -> (i32, i32) {
    %c0_i32 = arith.constant 0 : i32
    %c0_i32_0 = arith.constant 0 : i32
    %c0_i32_1 = arith.constant 0 : i32
    return %c0_i32, %c0_i32_0 : i32, i32
  }
  func.func @transform_7(%arg0: i32) -> (i32, i32) {
    %c0_i32 = arith.constant 0 : i32
    %c0_i32_0 = arith.constant 0 : i32
    %c0_i32_1 = arith.constant 0 : i32
    return %c0_i32, %c0_i32_0 : i32, i32
  }
  func.func @transform_8(%arg0: i32) -> (i32, i32, i32) {
    %c0_i32 = arith.constant 0 : i32
    %c0_i32_0 = arith.constant 0 : i32
    %c0_i32_1 = arith.constant 0 : i32
    return %arg0, %c0_i32, %c0_i32_0 : i32, i32, i32
  }
}

</mosaic_0001>

<llo_original>
// kernel: gunit_forward.1
$region0: #{gunit_forward.1}
  #allocation0 [shape = 'u32[]', space=smem, size = 0x4, offset = 0x4, fixed_abs, tag = 'smem constant byte address 0x4 - core index']
  #allocation1 [shape = 'u32[72,128]{1,0:T(1,128)}', space=vmem, size = 0x9000, scoped, tag = 'internal scratch']
  #allocation2 [shape = 'f32[1,1]{1,0:T(1,128)S(1)}', space=vmem, size = 0x200, scoped, tag = 'scoped memory for gunit_forward.1']
  %s0 = inlined_call_operand.vmem [shape: f32[2,16,256], index: 0, kind: input, shape index: {}]
  %s1 = inlined_call_operand.vmem [shape: f32[1,16], index: 1, kind: input, shape index: {}]
  %s2 = inlined_call_operand.<no memory space> [shape: f32[1,1], index: 2, kind: input, shape index: {}]
  %s3 = inlined_call_operand.vmem [shape: f32[16,16], index: 3, kind: input, shape index: {}]
  %s4 = inlined_call_operand.vmem [shape: f32[16,1], index: 4, kind: input, shape index: {}]
  %s5 = inlined_call_operand.vmem [shape: f32[16,1], index: 5, kind: input, shape index: {}]
  %s6 = inlined_call_operand.vmem [shape: bf16[32,16], index: 6, kind: input, shape index: {}]
  %s7 = inlined_call_operand.vmem [shape: f32[32,1], index: 7, kind: input, shape index: {}]
  %s8 = inlined_call_operand.vmem [shape: f32[2,32,256], index: 8, kind: output, shape index: {}]
  %s9 = sld [smem:[#allocation0]]
  $region65: #{gunit_forward.1} parent=0
    _
  %s11 = ssub.s32 1, %s9
  %s12 = scalar_select 0, %s11, %s9
  %v13 = vstv %s2
  %14 = vst [vmem:[#allocation2] sm:$0x1] %v13
  loop: start=0, step=1, limit=4
  $region2: #{gunit_forward.1} parent=0 // loop_pre_header
    _
  $region3: #{gunit_forward.1} parent=0 // loop_header
    %s16 = sphi 0, %s20
    %p17 = scmp.ge.s32.totalorder %s16, 4
    %s26 = sphi 0, %s28
    %s29 = sphi 0, %s26
    %s30 = sphi 0, %s29
    %s46 = sphi 0, %s30
    %s50 = sphi 0, %s50
    %s52 = sphi 0, %s50
    %s53 = sphi 0, %s52
    %s67 = sphi 0, %s53
    %s71 = sphi 0, %s71
    %s73 = sphi 0, %s71
    %s74 = sphi 0, %s73
    %s88 = sphi 0, %s74
    %s92 = sphi 0, %s92
    %s94 = sphi 0, %s92
    %s95 = sphi 0, %s94
    %s109 = sphi 0, %s95
    %s113 = sphi 0, %s113
    %s115 = sphi 0, %s113
    %s116 = sphi 0, %s115
    %s130 = sphi 0, %s116
    %s134 = sphi 0, %s134
    %s136 = sphi 0, %s134
    %s137 = sphi 0, %s136
    %s151 = sphi 0, %s137
    %s155 = sphi 0, %s155
    %s157 = sphi 0, %s155
    %s158 = sphi 0, %s157
    %s172 = sphi 0, %s158
    %s176 = sphi 0, %s176
    %s178 = sphi 0, %s176
    %s179 = sphi 0, %s178
    %s193 = sphi 0, %s179
    %s199 = sphi 0, %s201
    %s202 = sphi 0, %s199
    %s203 = sphi 0, %s202
    %s219 = sphi 0, %s203
  $region4: #{gunit_forward.1} parent=0 // loop_header_branch
    %19 = sbr.rel (%p17) target = $region8
  $region5: #{gunit_forward.1} parent=0 // loop_body
    %s21 = ssub.s32 %s16, 1
    %s22 = ssub.s32 %s16, 2
    %s23 = sadd.s32 %s16, 1
    %s24 = ssub.s32 %s16, %s23
    %p25 = scmp.eq.s32.totalorder %s24, 0
    %s27 = sadd.s32 %s26, 1
    %s28 = scalar_select %p25, %s26, %s27
    %p31 = pneg %p25
    %p32 = scmp.eq.s32.totalorder %s16, 1
    %p33 = por %p31, %p32
    %p34 = scmp.ne.s32.totalorder %s26, %s29
    %p35 = scmp.eq.s32.totalorder %s16, 0
    %p36 = por %p34, %p35
    %p37 = scmp.ne.s32.totalorder %s26, %s29
    %p38 = scmp.eq.s32.totalorder %s21, 1
    %p39 = por %p37, %p38
    %p40 = scmp.ne.s32.totalorder %s29, %s30
    %p41 = scmp.eq.s32.totalorder %s21, 0
    %p42 = por %p40, %p41
    %p43 = scmp.ne.s32.totalorder %s29, %s30
    %p44 = scmp.eq.s32.totalorder %s22, 1
    %p45 = por %p43, %p44
    %p47 = scmp.ne.s32.totalorder %s30, %s46
    %p48 = scmp.eq.s32.totalorder %s22, 0
    %p49 = por %p47, %p48
    %s51 = sadd.s32 %s50, 1
    %p54 = scmp.eq.s32.totalorder %s16, 1
    %p55 = scmp.ne.s32.totalorder %s50, %s52
    %p56 = scmp.eq.s32.totalorder %s16, 0
    %p57 = por %p55, %p56
    %p58 = scmp.ne.s32.totalorder %s50, %s52
    %p59 = scmp.eq.s32.totalorder %s21, 1
    %p60 = por %p58, %p59
    %p61 = scmp.ne.s32.totalorder %s52, %s53
    %p62 = scmp.eq.s32.totalorder %s21, 0
    %p63 = por %p61, %p62
    %p64 = scmp.ne.s32.totalorder %s52, %s53
    %p65 = scmp.eq.s32.totalorder %s22, 1
    %p66 = por %p64, %p65
    %p68 = scmp.ne.s32.totalorder %s53, %s67
    %p69 = scmp.eq.s32.totalorder %s22, 0
    %p70 = por %p68, %p69
    %s72 = sadd.s32 %s71, 1
    %p75 = scmp.eq.s32.totalorder %s16, 1
    %p76 = scmp.ne.s32.totalorder %s71, %s73
    %p77 = scmp.eq.s32.totalorder %s16, 0
    %p78 = por %p76, %p77
    %p79 = scmp.ne.s32.totalorder %s71, %s73
    %p80 = scmp.eq.s32.totalorder %s21, 1
    %p81 = por %p79, %p80
    %p82 = scmp.ne.s32.totalorder %s73, %s74
    %p83 = scmp.eq.s32.totalorder %s21, 0
    %p84 = por %p82, %p83
    %p85 = scmp.ne.s32.totalorder %s73, %s74
    %p86 = scmp.eq.s32.totalorder %s22, 1
    %p87 = por %p85, %p86
    %p89 = scmp.ne.s32.totalorder %s74, %s88
    %p90 = scmp.eq.s32.totalorder %s22, 0
    %p91 = por %p89, %p90
    %s93 = sadd.s32 %s92, 1
    %p96 = scmp.eq.s32.totalorder %s16, 1
    %p97 = scmp.ne.s32.totalorder %s92, %s94
    %p98 = scmp.eq.s32.totalorder %s16, 0
    %p99 = por %p97, %p98
    %p100 = scmp.ne.s32.totalorder %s92, %s94
    %p101 = scmp.eq.s32.totalorder %s21, 1
    %p102 = por %p100, %p101
    %p103 = scmp.ne.s32.totalorder %s94, %s95
    %p104 = scmp.eq.s32.totalorder %s21, 0
    %p105 = por %p103, %p104
    %p106 = scmp.ne.s32.totalorder %s94, %s95
    %p107 = scmp.eq.s32.totalorder %s22, 1
    %p108 = por %p106, %p107
    %p110 = scmp.ne.s32.totalorder %s95, %s109
    %p111 = scmp.eq.s32.totalorder %s22, 0
    %p112 = por %p110, %p111
    %s114 = sadd.s32 %s113, 1
    %p117 = scmp.eq.s32.totalorder %s16, 1
    %p118 = scmp.ne.s32.totalorder %s113, %s115
    %p119 = scmp.eq.s32.totalorder %s16, 0
    %p120 = por %p118, %p119
    %p121 = scmp.ne.s32.totalorder %s113, %s115
    %p122 = scmp.eq.s32.totalorder %s21, 1
    %p123 = por %p121, %p122
    %p124 = scmp.ne.s32.totalorder %s115, %s116
    %p125 = scmp.eq.s32.totalorder %s21, 0
    %p126 = por %p124, %p125
    %p127 = scmp.ne.s32.totalorder %s115, %s116
    %p128 = scmp.eq.s32.totalorder %s22, 1
    %p129 = por %p127, %p128
    %p131 = scmp.ne.s32.totalorder %s116, %s130
    %p132 = scmp.eq.s32.totalorder %s22, 0
    %p133 = por %p131, %p132
    %s135 = sadd.s32 %s134, 1
    %p138 = scmp.eq.s32.totalorder %s16, 1
    %p139 = scmp.ne.s32.totalorder %s134, %s136
    %p140 = scmp.eq.s32.totalorder %s16, 0
    %p141 = por %p139, %p140
    %p142 = scmp.ne.s32.totalorder %s134, %s136
    %p143 = scmp.eq.s32.totalorder %s21, 1
    %p144 = por %p142, %p143
    %p145 = scmp.ne.s32.totalorder %s136, %s137
    %p146 = scmp.eq.s32.totalorder %s21, 0
    %p147 = por %p145, %p146
    %p148 = scmp.ne.s32.totalorder %s136, %s137
    %p149 = scmp.eq.s32.totalorder %s22, 1
    %p150 = por %p148, %p149
    %p152 = scmp.ne.s32.totalorder %s137, %s151
    %p153 = scmp.eq.s32.totalorder %s22, 0
    %p154 = por %p152, %p153
    %s156 = sadd.s32 %s155, 1
    %p159 = scmp.eq.s32.totalorder %s16, 1
    %p160 = scmp.ne.s32.totalorder %s155, %s157
    %p161 = scmp.eq.s32.totalorder %s16, 0
    %p162 = por %p160, %p161
    %p163 = scmp.ne.s32.totalorder %s155, %s157
    %p164 = scmp.eq.s32.totalorder %s21, 1
    %p165 = por %p163, %p164
    %p166 = scmp.ne.s32.totalorder %s157, %s158
    %p167 = scmp.eq.s32.totalorder %s21, 0
    %p168 = por %p166, %p167
    %p169 = scmp.ne.s32.totalorder %s157, %s158
    %p170 = scmp.eq.s32.totalorder %s22, 1
    %p171 = por %p169, %p170
    %p173 = scmp.ne.s32.totalorder %s158, %s172
    %p174 = scmp.eq.s32.totalorder %s22, 0
    %p175 = por %p173, %p174
    %s177 = sadd.s32 %s176, 1
    %p180 = scmp.eq.s32.totalorder %s16, 1
    %p181 = scmp.ne.s32.totalorder %s176, %s178
    %p182 = scmp.eq.s32.totalorder %s16, 0
    %p183 = por %p181, %p182
    %p184 = scmp.ne.s32.totalorder %s176, %s178
    %p185 = scmp.eq.s32.totalorder %s21, 1
    %p186 = por %p184, %p185
    %p187 = scmp.ne.s32.totalorder %s178, %s179
    %p188 = scmp.eq.s32.totalorder %s21, 0
    %p189 = por %p187, %p188
    %p190 = scmp.ne.s32.totalorder %s178, %s179
    %p191 = scmp.eq.s32.totalorder %s22, 1
    %p192 = por %p190, %p191
    %p194 = scmp.ne.s32.totalorder %s179, %s193
    %p195 = scmp.eq.s32.totalorder %s22, 0
    %p196 = por %p194, %p195
    %s197 = ssub.s32 %s16, %s23
    %p198 = scmp.eq.s32.totalorder %s197, 0
    %s200 = sadd.s32 %s199, 1
    %s201 = scalar_select %p198, %s199, %s200
    %p204 = pneg %p198
    %p205 = scmp.eq.s32.totalorder %s16, 1
    %p206 = por %p204, %p205
    %p207 = scmp.ne.s32.totalorder %s199, %s202
    %p208 = scmp.eq.s32.totalorder %s16, 0
    %p209 = por %p207, %p208
    %p210 = scmp.ne.s32.totalorder %s199, %s202
    %p211 = scmp.eq.s32.totalorder %s21, 1
    %p212 = por %p210, %p211
    %p213 = scmp.ne.s32.totalorder %s202, %s203
    %p214 = scmp.eq.s32.totalorder %s21, 0
    %p215 = por %p213, %p214
    %p216 = scmp.ne.s32.totalorder %s202, %s203
    %p217 = scmp.eq.s32.totalorder %s22, 1
    %p218 = por %p216, %p217
    %p220 = scmp.ne.s32.totalorder %s203, %s219
    %p221 = scmp.eq.s32.totalorder %s22, 0
    %p222 = por %p220, %p221
    %p223 = scmp.le.s32.totalorder 1, %s16
    %p224 = scmp.lt.s32.totalorder %s16, 3
    %p225 = pnand %p223, %p224
    %p226 = pneg %p225
    // Predicated region
    $region9: #{gunit_forward.1} parent=5 // pred_check
      _
    $region10: #{gunit_forward.1} parent=5 // pred_check_branch
      %228 = sbr.rel (%p225) target = $region12
    $region11: #{gunit_forward.1} parent=5 // pred_region
      %s229 = ssub.s32 %s16, 1
      // Predicated region
      $region13: #{gunit_forward.1} parent=11 // pred_check
        %p230 = pneg %p63
      $region14: #{gunit_forward.1} parent=11 // pred_check_branch
        %232 = sbr.rel (%p230) target = $region16
      $region15: #{gunit_forward.1} parent=11 // pred_region
        _
      $region16: #{gunit_forward.1} parent=11 // pred_fallthru
        _
      // Predicated region
      $region17: #{gunit_forward.1} parent=11 // pred_check
        %p233 = pneg %p84
      $region18: #{gunit_forward.1} parent=11 // pred_check_branch
        %235 = sbr.rel (%p233) target = $region20
      $region19: #{gunit_forward.1} parent=11 // pred_region
        _
      $region20: #{gunit_forward.1} parent=11 // pred_fallthru
        _
      // Predicated region
      $region21: #{gunit_forward.1} parent=11 // pred_check
        %p236 = pneg %p105
      $region22: #{gunit_forward.1} parent=11 // pred_check_branch
        %238 = sbr.rel (%p236) target = $region24
      $region23: #{gunit_forward.1} parent=11 // pred_region
        _
      $region24: #{gunit_forward.1} parent=11 // pred_fallthru
        _
      // Predicated region
      $region25: #{gunit_forward.1} parent=11 // pred_check
        %p239 = pneg %p126
      $region26: #{gunit_forward.1} parent=11 // pred_check_branch
        %241 = sbr.rel (%p239) target = $region28
      $region27: #{gunit_forward.1} parent=11 // pred_region
        _
      $region28: #{gunit_forward.1} parent=11 // pred_fallthru
        _
      // Predicated region
      $region29: #{gunit_forward.1} parent=11 // pred_check
        %p242 = pneg %p147
      $region30: #{gunit_forward.1} parent=11 // pred_check_branch
        %244 = sbr.rel (%p242) target = $region32
      $region31: #{gunit_forward.1} parent=11 // pred_region
        _
      $region32: #{gunit_forward.1} parent=11 // pred_fallthru
        _
      // Predicated region
      $region33: #{gunit_forward.1} parent=11 // pred_check
        %p245 = pneg %p168
      $region34: #{gunit_forward.1} parent=11 // pred_check_branch
        %247 = sbr.rel (%p245) target = $region36
      $region35: #{gunit_forward.1} parent=11 // pred_region
        _
      $region36: #{gunit_forward.1} parent=11 // pred_fallthru
        _
      // Predicated region
      $region37: #{gunit_forward.1} parent=11 // pred_check
        %p248 = pneg %p189
      $region38: #{gunit_forward.1} parent=11 // pred_check_branch
        %250 = sbr.rel (%p248) target = $region40
      $region39: #{gunit_forward.1} parent=11 // pred_region
        _
      $region40: #{gunit_forward.1} parent=11 // pred_fallthru
        _
    $region12: #{gunit_forward.1} parent=5 // pred_fallthru
      _
    %p251 = scmp.lt.s32.totalorder %s16, 2
    // Predicated region
    $region41: #{gunit_forward.1} parent=5 // pred_check
      %p252 = pneg %p251
    $region42: #{gunit_forward.1} parent=5 // pred_check_branch
      %254 = sbr.rel (%p252) target = $region44
    $region43: #{gunit_forward.1} parent=5 // pred_region
      // Predicated region
      $region45: #{gunit_forward.1} parent=43 // pred_check
        %p255 = pneg %p36
      $region46: #{gunit_forward.1} parent=43 // pred_check_branch
        %257 = sbr.rel (%p255) target = $region48
      $region47: #{gunit_forward.1} parent=43 // pred_region
        %p258 = scmp.lt.s32.totalorder %s16, 1
        %s259 = scalar_select %p258, %s16, 1
        %s260 = smul.addr %s259, 4
        %s261 = smul.addr %s260, 8
        %s262 = scalar_lea.vmem %s0, %s261
      $region48: #{gunit_forward.1} parent=43 // pred_fallthru
        _
    $region44: #{gunit_forward.1} parent=5 // pred_fallthru
      _
    %p263 = scmp.le.s32.totalorder 1, %s16
    %p264 = scmp.lt.s32.totalorder %s16, 3
    %p265 = pnand %p263, %p264
    %p266 = pneg %p265
    // Predicated region
    $region49: #{gunit_forward.1} parent=5 // pred_check
      _
    $region50: #{gunit_forward.1} parent=5 // pred_check_branch
      %268 = sbr.rel (%p265) target = $region52
    $region51: #{gunit_forward.1} parent=5 // pred_region
      %s269 = ssub.s32 %s16, 1
      %p270 = scmp.lt.s32.totalorder %s21, 1
      %s271 = scalar_select %p270, %s21, 1
      %s272 = smul.addr %s271, 4
      %s273 = smul.addr %s272, 8
      %s274 = scalar_lea.vmem %s0, %s273
      %p275 = pneg %p42
      %p276 = pneg %p39
      %p277 = pneg %p63
      %p278 = pneg %p60
      %p279 = pneg %p84
      %p280 = pneg %p81
      %p281 = pneg %p105
      %p282 = pneg %p102
      %p283 = pneg %p126
      %p284 = pneg %p123
      %p285 = pneg %p147
      %p286 = pneg %p144
      %p287 = pneg %p168
      %p288 = pneg %p165
      %p289 = pneg %p189
      %p290 = pneg %p186
      %p291 = pneg %p215
      %p292 = pneg %p212
      %p293 = scmp.lt.s32.totalorder %s21, 1
      %s294 = scalar_select %p293, %s21, 1
      %s295 = smul.addr %s294, 8
      %s296 = smul.addr %s295, 8
      %s297 = scalar_lea.vmem %s8, %s296
      %p298 = scmp.lt.s32.totalorder %s21, 1
      %s299 = scalar_select %p298, %s21, 1
      %s300 = smul.addr %s299, 4
      %s301 = smul.addr %s300, 8
      %s302 = scalar_lea.vmem %s0, %s301
      %p303 = scmp.lt.s32.totalorder %s21, 1
      %s304 = scalar_select %p303, %s21, 1
      %s305 = smul.addr %s304, 8
      %s306 = smul.addr %s305, 8
      %s307 = scalar_lea.vmem %s8, %s306
      %v309 = vld [vmem:[%s302] sm:$0xff]
      %v310 = vld [vmem:[%s302 + $0x8] sm:$0xff]
      %v311 = vld [vmem:[%s302 + $0x10] sm:$0xff]
      %v312 = vld [vmem:[%s302 + $0x18] sm:$0xff]
      %v313 = vld [vmem:[%s1] sm:$0x1]
      %v314 = vld [vmem:[#allocation2] sm:$0x1]
      %316 = vset.pattern.permute.xlu0 0
      %317 = vperm.xlu0 %316, %v314
      %v318 = vpop.permute.xlu0 %317
      %v320 = vperm.slane %v318, 0
      %vm321 = vcmask 130048
      %v323 = vsel %vm321, %v313, 0
      %325 = vmatpush.msra.mxu0 0.0
      %326 = vmatpush.msra.mxu0 0.0
      %327 = vmatpush.msra.mxu0 0.0
      %328 = vmatpush.msra.mxu0 0.0
      %329 = vmatpush.msra.mxu0 0.0
      %330 = vmatpush.msra.mxu0 0.0
      %331 = vmatpush.msra.mxu0 0.0
      %332 = vmatpush.msra.mxu0 0.0
      %333 = vmatpush.msra.mxu0 0.0
      %334 = vmatpush.msra.mxu0 0.0
      %335 = vmatpush.msra.mxu0 0.0
      %336 = vmatpush.msra.mxu0 0.0
      %337 = vmatpush.msra.mxu0 0.0
      %338 = vmatpush.msra.mxu0 0.0
      %339 = vmatpush.msra.mxu0 %v311
      %340 = vmatpush.msra.mxu0 %v309
      %341 = vmatmul.f32.gmra.mxu0 %v323
      %v342 = vpop.f32.mrf.mxu0
      %v343 = vadd.f32 %v320, %v342
      %344 = vdwg.mxu0
      %345 = vmatpush.msra.mxu0 0.0
      %346 = vmatpush.msra.mxu0 0.0
      %347 = vmatpush.msra.mxu0 0.0
      %348 = vmatpush.msra.mxu0 0.0
      %349 = vmatpush.msra.mxu0 0.0
      %350 = vmatpush.msra.mxu0 0.0
      %351 = vmatpush.msra.mxu0 0.0
      %352 = vmatpush.msra.mxu0 0.0
      %353 = vmatpush.msra.mxu0 0.0
      %354 = vmatpush.msra.mxu0 0.0
      %355 = vmatpush.msra.mxu0 0.0
      %356 = vmatpush.msra.mxu0 0.0
      %357 = vmatpush.msra.mxu0 0.0
      %358 = vmatpush.msra.mxu0 0.0
      %359 = vmatpush.msra.mxu0 %v312
      %360 = vmatpush.msra.mxu0 %v310
      %361 = vmatmul.f32.gmra.mxu0 %v323
      %v362 = vpop.f32.mrf.mxu0
      %v363 = vadd.f32 %v320, %v362
      %364 = vdwg.mxu0
      %v365 = vxor.u32 %v343, 2147483648
      %v366 = vxor.u32 %v363, 2147483648
      %v367 = vmul.f32 %v365, 1.442695
      %v368 = vpow.pop %v367
      %v369 = vmul.f32 %v366, 1.442695
      %v370 = vpow.pop %v369
      %v371 = vadd.f32 %v368, 1.0
      %v372 = vadd.f32 %v370, 1.0
      %v373 = vrcp.pop %v371
      %v374 = vmul.f32 %v371, %v373
      %v375 = vsub.f32 1.0, %v374
      %v376 = vmul.f32 %v373, %v375
      %v377 = vadd.f32 %v373, %v376
      %vm378 = vweird.f32 %v371
      %vm379 = vweird.f32 %v373
      %vm380 = vmor %vm378, %vm379
      %v381 = vsel %vm380, %v373, %v377
      %v382 = vand.u32 2147483647, %v371
      %vm383 = vcmp.eq.f32.partialorder %v382, 8.507059e+37
      %v384 = vand.u32 %v371, 2147483648
      %v385 = vor.u32 1.1754944e-38, %v384
      %v386 = vsel %vm383, %v385, %v381
      %v387 = vmul.f32 1.0, %v386
      %v388 = vrcp.pop %v372
      %v389 = vmul.f32 %v372, %v388
      %v390 = vsub.f32 1.0, %v389
      %v391 = vmul.f32 %v388, %v390
      %v392 = vadd.f32 %v388, %v391
      %vm393 = vweird.f32 %v372
      %vm394 = vweird.f32 %v388
      %vm395 = vmor %vm393, %vm394
      %v396 = vsel %vm395, %v388, %v392
      %v397 = vand.u32 2147483647, %v372
      %vm398 = vcmp.eq.f32.partialorder %v397, 8.507059e+37
      %v399 = vand.u32 %v372, 2147483648
      %v400 = vor.u32 1.1754944e-38, %v399
      %v401 = vsel %vm398, %v400, %v396
      %v402 = vmul.f32 1.0, %v401
      %v403 = vperm.slane %v387, 0
      %v404 = vperm.slane %v402, 0
      %v405 = vmul.f32 %v309, %v403
      %v406 = vmul.f32 %v310, %v404
      %v407 = vmul.f32 %v311, %v403
      %v408 = vmul.f32 %v312, %v404
      %v409 = vadd.f32 %v309, %v310
      %410 = vadd.xlane.f32.xlu0 %v409
      %v411 = vpop.xlane.xlu0 %410
      %v412 = vadd.f32 %v311, %v312
      %413 = vadd.xlane.f32.xlu0 %v412
      %v414 = vpop.xlane.xlu0 %413
      %v415 = vmul.f32 %v309, %v309
      %v416 = vmul.f32 %v310, %v310
      %v417 = vmul.f32 %v311, %v311
      %v418 = vmul.f32 %v312, %v312
      %v419 = vadd.f32 %v415, %v416
      %420 = vadd.xlane.f32.xlu0 %v419
      %v421 = vpop.xlane.xlu0 %420
      %v422 = vadd.f32 %v417, %v418
      %423 = vadd.xlane.f32.xlu0 %v422
      %v424 = vpop.xlane.xlu0 %423
      %v425 = vld [vmem:[%s3] sm:$0xff]
      %v426 = vld [vmem:[%s3 + $0x8] sm:$0xff]
      %v428 = vsel %vm321, %v425, 0
      %v431 = vsel %vm321, %v426, 0
      %433 = vmatpush.msra.mxu0 0.0
      %434 = vmatpush.msra.mxu0 0.0
      %435 = vmatpush.msra.mxu0 0.0
      %436 = vmatpush.msra.mxu0 0.0
      %437 = vmatpush.msra.mxu0 0.0
      %438 = vmatpush.msra.mxu0 0.0
      %439 = vmatpush.msra.mxu0 0.0
      %440 = vmatpush.msra.mxu0 0.0
      %441 = vmatpush.msra.mxu0 0.0
      %442 = vmatpush.msra.mxu0 0.0
      %443 = vmatpush.msra.mxu0 0.0
      %444 = vmatpush.msra.mxu0 0.0
      %445 = vmatpush.msra.mxu0 0.0
      %446 = vmatpush.msra.mxu0 0.0
      %447 = vmatpush.msra.mxu0 %v414
      %448 = vmatpush.msra.mxu0 %v411
      %449 = vmatmul.f32.gmra.mxu0 %v428
      %v450 = vpop.f32.mrf.mxu0
      %v451 = vadd.f32 0.0, %v450
      %452 = vmatmul.f32.gmra.mxu0 %v431
      %v453 = vpop.f32.mrf.mxu0
      %v454 = vadd.f32 0.0, %v453
      %455 = vdwg.mxu0
      %456 = vmatpush.msra.mxu0 0.0
      %457 = vmatpush.msra.mxu0 0.0
      %458 = vmatpush.msra.mxu0 0.0
      %459 = vmatpush.msra.mxu0 0.0
      %460 = vmatpush.msra.mxu0 0.0
      %461 = vmatpush.msra.mxu0 0.0
      %462 = vmatpush.msra.mxu0 0.0
      %463 = vmatpush.msra.mxu0 0.0
      %464 = vmatpush.msra.mxu0 0.0
      %465 = vmatpush.msra.mxu0 0.0
      %466 = vmatpush.msra.mxu0 0.0
      %467 = vmatpush.msra.mxu0 0.0
      %468 = vmatpush.msra.mxu0 0.0
      %469 = vmatpush.msra.mxu0 0.0
      %470 = vmatpush.msra.mxu0 %v424
      %471 = vmatpush.msra.mxu0 %v421
      %472 = vmatmul.f32.gmra.mxu0 %v428
      %v473 = vpop.f32.mrf.mxu0
      %v474 = vadd.f32 0.0, %v473
      %475 = vmatmul.f32.gmra.mxu0 %v431
      %v476 = vpop.f32.mrf.mxu0
      %v477 = vadd.f32 0.0, %v476
      %478 = vdwg.mxu0
      %v479 = vmul.f32 %v451, 0.00390625
      %v480 = vmul.f32 %v454, 0.00390625
      %v481 = vmul.f32 %v451, %v479
      %v482 = vmul.f32 %v454, %v480
      %v483 = vsub.f32 %v474, %v481
      %v484 = vsub.f32 %v477, %v482
      %v485 = vmax.f32 %v483, 0.0
      %v486 = vmax.f32 %v484, 0.0
      %v487 = vmul.f32 %v485, 0.003921569
      %v488 = vmul.f32 %v486, 0.003921569
      %v489 = vrsqrt.pop %v487
      %v490 = vmul.f32 %v489, %v487
      %v491 = vmul.f32 %v490, %v489
      %v492 = vmul.f32 0.5, %v491
      %v493 = vsub.f32 1.5, %v492
      %v494 = vmul.f32 %v489, %v493
      %v495 = vmul.f32 %v487, %v494
      %vm496 = vcmp.eq.f32.partialorder %v487, inf
      %v497 = vsel %vm496, %v487, %v495
      %vm498 = vcmp.eq.f32.partialorder %v487, 0.0
      %v499 = vand.u32 %v487, 2147483648
      %v500 = vsel %vm498, %v499, %v497
      %v501 = vrsqrt.pop %v488
      %v502 = vmul.f32 %v501, %v488
      %v503 = vmul.f32 %v502, %v501
      %v504 = vmul.f32 0.5, %v503
      %v505 = vsub.f32 1.5, %v504
      %v506 = vmul.f32 %v501, %v505
      %v507 = vmul.f32 %v488, %v506
      %vm508 = vcmp.eq.f32.partialorder %v488, inf
      %v509 = vsel %vm508, %v488, %v507
      %vm510 = vcmp.eq.f32.partialorder %v488, 0.0
      %v511 = vand.u32 %v488, 2147483648
      %v512 = vsel %vm510, %v511, %v509
      %v513 = vadd.f32 %v500, 1e-10
      %v514 = vadd.f32 %v512, 1e-10
      %v515 = vrcp.pop %v513
      %v516 = vmul.f32 %v513, %v515
      %v517 = vsub.f32 1.0, %v516
      %v518 = vmul.f32 %v515, %v517
      %v519 = vadd.f32 %v515, %v518
      %vm520 = vweird.f32 %v513
      %vm521 = vweird.f32 %v515
      %vm522 = vmor %vm520, %vm521
      %v523 = vsel %vm522, %v515, %v519
      %v524 = vand.u32 2147483647, %v513
      %vm525 = vcmp.eq.f32.partialorder %v524, 8.507059e+37
      %v526 = vand.u32 %v513, 2147483648
      %v527 = vor.u32 1.1754944e-38, %v526
      %v528 = vsel %vm525, %v527, %v523
      %v529 = vmul.f32 1.0, %v528
      %v530 = vrcp.pop %v514
      %v531 = vmul.f32 %v514, %v530
      %v532 = vsub.f32 1.0, %v531
      %v533 = vmul.f32 %v530, %v532
      %v534 = vadd.f32 %v530, %v533
      %vm535 = vweird.f32 %v514
      %vm536 = vweird.f32 %v530
      %vm537 = vmor %vm535, %vm536
      %v538 = vsel %vm537, %v530, %v534
      %v539 = vand.u32 2147483647, %v514
      %vm540 = vcmp.eq.f32.partialorder %v539, 8.507059e+37
      %v541 = vand.u32 %v514, 2147483648
      %v542 = vor.u32 1.1754944e-38, %v541
      %v543 = vsel %vm540, %v542, %v538
      %v544 = vmul.f32 1.0, %v543
      %v545 = vld [vmem:[%s4] sm:$0xff]
      %v546 = vld [vmem:[%s4 + $0x8] sm:$0xff]
      %v547 = vmul.f32 %v545, %v529
      %v548 = vmul.f32 %v546, %v544
      %550 = vset.pattern.permute.xlu0 0
      %551 = vperm.xlu0 %550, %v479
      %v552 = vpop.permute.xlu0 %551
      %555 = vset.pattern.permute.xlu0 0
      %556 = vperm.xlu0 %555, %v480
      %v557 = vpop.permute.xlu0 %556
      %v559 = vsub.f32 %v405, %v552
      %v560 = vsub.f32 %v406, %v552
      %v561 = vsub.f32 %v407, %v557
      %v562 = vsub.f32 %v408, %v557
      %564 = vset.pattern.permute.xlu0 0
      %565 = vperm.xlu0 %564, %v547
      %v566 = vpop.permute.xlu0 %565
      %569 = vset.pattern.permute.xlu0 0
      %570 = vperm.xlu0 %569, %v548
      %v571 = vpop.permute.xlu0 %570
      %v573 = vmul.f32 %v559, %v566
      %v574 = vmul.f32 %v560, %v566
      %v575 = vmul.f32 %v561, %v571
      %v576 = vmul.f32 %v562, %v571
      %v577 = vld [vmem:[%s5] sm:$0xff]
      %v578 = vld [vmem:[%s5 + $0x8] sm:$0xff]
      %580 = vset.pattern.permute.xlu0 0
      %581 = vperm.xlu0 %580, %v577
      %v582 = vpop.permute.xlu0 %581
      %585 = vset.pattern.permute.xlu0 0
      %586 = vperm.xlu0 %585, %v578
      %v587 = vpop.permute.xlu0 %586
      %v589 = vadd.f32 %v573, %v582
      %v590 = vadd.f32 %v574, %v582
      %v591 = vadd.f32 %v575, %v587
      %v592 = vadd.f32 %v576, %v587
      %v593 = vld [vmem:[%s6] sm:$0xf]
      %v594 = vld [vmem:[%s6 + $0x4] sm:$0xf]
      %v595 = vld [vmem:[%s6 + $0x8] sm:$0xf]
      %v596 = vld [vmem:[%s6 + $0xc] sm:$0xf]
      %v597 = vpack.c.bf16 %v591, %v589
      %v598 = vpack.c.bf16 %v592, %v590
      %v599 = vld [vmem:[%s7] sm:$0xff]
      %v600 = vld [vmem:[%s7 + $0x8] sm:$0xff]
      %v601 = vld [vmem:[%s7 + $0x10] sm:$0xff]
      %v602 = vld [vmem:[%s7 + $0x18] sm:$0xff]
      %604 = vset.pattern.permute.xlu0 0
      %605 = vperm.xlu0 %604, %v599
      %v606 = vpop.permute.xlu0 %605
      %609 = vset.pattern.permute.xlu0 0
      %610 = vperm.xlu0 %609, %v600
      %v611 = vpop.permute.xlu0 %610
      %614 = vset.pattern.permute.xlu0 0
      %615 = vperm.xlu0 %614, %v601
      %v616 = vpop.permute.xlu0 %615
      %619 = vset.pattern.permute.xlu0 0
      %620 = vperm.xlu0 %619, %v602
      %v621 = vpop.permute.xlu0 %620
      %v627 = vunpack.c.l.b16 %v593
      %v628 = vunpack.c.l.b16 %v594
      %v629 = vunpack.c.l.b16 %v595
      %v630 = vunpack.c.l.b16 %v596
      %v631 = vpack.c.b16 %v628, %v627
      %v632 = vpack.c.b16 %v630, %v629
      %v634 = vsel %vm321, %v631, 0
      %v637 = vsel %vm321, %v632, 0
      %639 = vmatpush.bf16.msra.mxu0 0
      %640 = vmatpush.bf16.msra.mxu0 0
      %641 = vmatpush.bf16.msra.mxu0 0
      %642 = vmatpush.bf16.msra.mxu0 0
      %643 = vmatpush.bf16.msra.mxu0 0
      %644 = vmatpush.bf16.msra.mxu0 0
      %645 = vmatpush.bf16.msra.mxu0 0
      %646 = vmatpush.bf16.msra.mxu0 %v597
      %647 = vmatmul.bf16.gmra.mxu0 %v634
      %v648 = vpop.f32.mrf.mxu0
      %v649 = vadd.f32 %v606, %v648
      %v650 = vpop.f32.mrf.mxu0
      %v651 = vadd.f32 %v611, %v650
      %652 = vmatmul.bf16.gmra.mxu0 %v637
      %v653 = vpop.f32.mrf.mxu0
      %v654 = vadd.f32 %v616, %v653
      %v655 = vpop.f32.mrf.mxu0
      %v656 = vadd.f32 %v621, %v655
      %657 = vdwg.mxu0
      %658 = vmatpush.bf16.msra.mxu0 0
      %659 = vmatpush.bf16.msra.mxu0 0
      %660 = vmatpush.bf16.msra.mxu0 0
      %661 = vmatpush.bf16.msra.mxu0 0
      %662 = vmatpush.bf16.msra.mxu0 0
      %663 = vmatpush.bf16.msra.mxu0 0
      %664 = vmatpush.bf16.msra.mxu0 0
      %665 = vmatpush.bf16.msra.mxu0 %v598
      %666 = vmatmul.bf16.gmra.mxu0 %v634
      %v667 = vpop.f32.mrf.mxu0
      %v668 = vadd.f32 %v606, %v667
      %v669 = vpop.f32.mrf.mxu0
      %v670 = vadd.f32 %v611, %v669
      %671 = vmatmul.bf16.gmra.mxu0 %v637
      %v672 = vpop.f32.mrf.mxu0
      %v673 = vadd.f32 %v616, %v672
      %v674 = vpop.f32.mrf.mxu0
      %v675 = vadd.f32 %v621, %v674
      %676 = vdwg.mxu0
      %677 = vst [vmem:[%s307] sm:$0xff] %v649
      %678 = vst [vmem:[%s307 + $0x8] sm:$0xff] %v668
      %679 = vst [vmem:[%s307 + $0x10] sm:$0xff] %v651
      %680 = vst [vmem:[%s307 + $0x18] sm:$0xff] %v670
      %681 = vst [vmem:[%s307 + $0x20] sm:$0xff] %v654
      %682 = vst [vmem:[%s307 + $0x28] sm:$0xff] %v673
      %683 = vst [vmem:[%s307 + $0x30] sm:$0xff] %v656
      %684 = vst [vmem:[%s307 + $0x38] sm:$0xff] %v675
      %p685 = scmp.lt.s32.totalorder %s21, 1
      %s686 = scalar_select %p685, %s21, 1
      %s687 = smul.addr %s686, 8
      %s688 = smul.addr %s687, 8
      %s689 = scalar_lea.vmem %s8, %s688
      // Predicated region
      $region53: #{gunit_forward.1} parent=51 // pred_check
        %p690 = pneg %p212
      $region54: #{gunit_forward.1} parent=51 // pred_check_branch
        %692 = sbr.rel (%p690) target = $region56
      $region55: #{gunit_forward.1} parent=51 // pred_region
        _
      $region56: #{gunit_forward.1} parent=51 // pred_fallthru
        _
    $region52: #{gunit_forward.1} parent=5 // pred_fallthru
      _
    %p693 = scmp.le.s32.totalorder 2, %s16
    // Predicated region
    $region57: #{gunit_forward.1} parent=5 // pred_check
      %p694 = pneg %p693
    $region58: #{gunit_forward.1} parent=5 // pred_check_branch
      %696 = sbr.rel (%p694) target = $region60
    $region59: #{gunit_forward.1} parent=5 // pred_region
      %s697 = ssub.s32 %s16, 2
      // Predicated region
      $region61: #{gunit_forward.1} parent=59 // pred_check
        %p698 = pneg %p218
      $region62: #{gunit_forward.1} parent=59 // pred_check_branch
        %700 = sbr.rel (%p698) target = $region64
      $region63: #{gunit_forward.1} parent=59 // pred_region
        %p701 = scmp.lt.s32.totalorder %s22, 1
        %s702 = scalar_select %p701, %s22, 1
        %s703 = smul.addr %s702, 8
        %s704 = smul.addr %s703, 8
        %s705 = scalar_lea.vmem %s8, %s704
      $region64: #{gunit_forward.1} parent=59 // pred_fallthru
        _
    $region60: #{gunit_forward.1} parent=5 // pred_fallthru
      _
  $region6: #{gunit_forward.1} parent=0 // loop_footer
    %s20 = sadd.s32 1, %s16
  $region7: #{gunit_forward.1} parent=0 // loop_footer_branch
    %15 = sbr.rel target = $region3
  $region8: #{gunit_forward.1} parent=0 // loop_exit
    _

</llo_original>
